<compile_context>
chip_gen: v5e
topology: v5e:2x2
jax: 0.10.0
libtpu: 0.0.40
codegen_flags: <defaults>
</compile_context>

<pallas_src>
import functools

import jax
import jax.numpy as jnp
from jax import lax
from jax.experimental import pallas as pl
from jax.experimental.pallas import tpu as pltpu


# ----------------------------- Pallas kernel --------------------------------
def _proj_ln_kernel(p_ref, w_ref, b_ref, g_ref, beta_ref, o_ref, *, inv_e):
    # p_ref: (TR, K)   im2col patch tile
    # w_ref: (K, Ep)   projection weight (zero-padded past the true embed dim)
    # b_ref/g_ref/beta_ref: (1, Ep) conv bias / LayerNorm gamma / beta (padded)
    # o_ref: (TR, Ep)  lane-dense output tile
    x = jnp.dot(p_ref[...], w_ref[...], preferred_element_type=jnp.float32)
    x = x + b_ref[...]
    # Single-pass LayerNorm statistics over the true embed dim E. The padded
    # lanes of x are exactly zero (w and b are zero there), so sums over Ep
    # equal sums over E; divide by E (inv_e), not Ep.
    s1 = jnp.sum(x, axis=-1, keepdims=True)
    s2 = jnp.sum(x * x, axis=-1, keepdims=True)
    mean = s1 * inv_e
    var = jnp.maximum(s2 * inv_e - mean * mean, 0.0)
    xn = (x - mean) * lax.rsqrt(var + 1e-5)
    # gamma/beta are zero in the padded lanes -> padded output lanes stay zero.
    o_ref[...] = (xn * g_ref[...] + beta_ref[...]).astype(o_ref.dtype)


def _pick_row_tile(rows, bytes_per_row):
    """Largest row tile that (a) fits a conservative cross-chip VMEM budget for
    the double-buffered patch+output tiles, (b) sits in the 1K-2K-row sweet
    spot that amortises the ~0.35us/step pipeline overhead, and (c) keeps >=4
    grid steps when there is enough work (megacore)."""
    budget = 20 << 20                                     # safe on v5e/v6e/v7x
    cap = max(256, ((budget // (2 * bytes_per_row)) // 256) * 256)
    target = min(2048, cap)
    if rows <= 4 * 256:                                   # tiny problem: 1 block
        return max(8, ((rows + 7) // 8) * 8)
    quarter = (((rows + 3) // 4) + 255) // 256 * 256      # >=4 grid steps
    return max(256, min(target, quarter))


def _pallas_proj_ln(patches, w_mat, bias, gamma, beta, *, e_true):
    rows, K = patches.shape
    Ep = w_mat.shape[1]
    row_tile = _pick_row_tile(rows, (K + Ep) * 4)
    grid = (pl.cdiv(rows, row_tile),)                     # ragged last block OK

    # Explicit VMEM budget: double-buffered in/out tiles + resident constants
    # (w + 3 vectors) + headroom for the kernel's f32 temporaries.
    vmem_bytes = (2 * row_tile * (K + Ep) * 4
                  + 2 * (K + 3) * Ep * 4
                  + 3 * row_tile * Ep * 4)
    vmem_limit = int(min(max(vmem_bytes, 32 << 20), 48 << 20))

    const_map = lambda i: (0, 0)
    # NOTE: w/bias/gamma/beta are grid-invariant; for very large K*E they could
    # be single-buffered (pipeline_mode=pl.Buffered(1)) to reclaim VMEM.  At
    # these sizes default double-buffering costs little, so keep the default
    # for portability across jax versions.
    kernel = functools.partial(_proj_ln_kernel, inv_e=1.0 / e_true)
    return pl.pallas_call(
        kernel,
        out_shape=jax.ShapeDtypeStruct((rows, Ep), jnp.float32),
        grid_spec=pltpu.PrefetchScalarGridSpec(
            num_scalar_prefetch=0,
            grid=grid,
            in_specs=[
                pl.BlockSpec((row_tile, K), lambda i: (i, 0)),
                pl.BlockSpec((K, Ep), const_map),
                pl.BlockSpec((1, Ep), const_map),
                pl.BlockSpec((1, Ep), const_map),
                pl.BlockSpec((1, Ep), const_map),
            ],
            out_specs=pl.BlockSpec((row_tile, Ep), lambda i: (i, 0)),
        ),
        compiler_params=pltpu.CompilerParams(
            dimension_semantics=("parallel",),
            vmem_limit_bytes=vmem_limit,
        ),
    )(patches, w_mat, bias, gamma, beta)


# ------------------------------ JAX wrapper ----------------------------------
@functools.partial(jax.jit, static_argnames=("stride",))
def _overlap_patch_embed_tokens(x, conv_w, conv_b, ln_g, ln_b, *, stride):
    N, C, H, W = x.shape
    E, _, kh, kw = conv_w.shape
    ph, pw = kh // 2, kw // 2
    Ho = (H + 2 * ph - kh) // stride + 1
    Wo = (W + 2 * pw - kw) // stride + 1
    rows = N * Ho * Wo
    K = C * kh * kw
    Ep = ((E + 127) // 128) * 128        # lane-dense embed dim inside the kernel

    # NHWC im2col: strided slices + channel-dim concat; the final reshape is
    # contiguous (no minor-dim transpose).
    xh = jnp.transpose(x, (0, 2, 3, 1))                       # (N, H, W, C)
    xp = jnp.pad(xh, ((0, 0), (ph, ph), (pw, pw), (0, 0)))
    views = [
        xp[:, i:i + stride * Ho:stride, j:j + stride * Wo:stride, :]
        for i in range(kh) for j in range(kw)
    ]                                                         # each (N,Ho,Wo,C)
    patches = jnp.concatenate(views, axis=-1).reshape(rows, K)

    # Projection weight in matching (tap-major, channel-minor) K order, padded
    # with zeros to the lane-dense Ep.
    w_mat = conv_w.transpose(2, 3, 1, 0).reshape(K, E)
    pad_e = ((0, 0), (0, Ep - E))
    w_mat = jnp.pad(w_mat, pad_e)
    bias = jnp.pad(conv_b.reshape(1, E), pad_e)
    gamma = jnp.pad(ln_g.reshape(1, E), pad_e)
    beta = jnp.pad(ln_b.reshape(1, E), pad_e)

    out = _pallas_proj_ln(patches, w_mat, bias, gamma, beta, e_true=E)
    if Ep != E:
        out = out[:, :E]
    # TODO(synk): emit bf16 (out_shape dtype + final astype) once the rest of
    # the model runs in bf16; kept f32 to match the PyTorch f32 reference.
    return out.reshape(N, Ho * Wo, E)


def overlap_patch_embed(x, conv_w, conv_b, ln_g, ln_b, *, stride=2):
    """x: (N, C, H, W) float32. conv_w: (E, C, kh, kw). Returns (tokens, Ho, Wo)
    with tokens of shape (N, Ho*Wo, E), matching OverlapPatchEmbed.forward
    with mask=None (mask_chans=0)."""
    # TODO(synk): the optional mask branch (Down_wt mask_proj) is not
    # implemented; the reference module defaults to mask=None.
    _, _, H, W = x.shape
    _, _, kh, kw = conv_w.shape
    ph, pw = kh // 2, kw // 2
    Ho = (H + 2 * ph - kh) // stride + 1
    Wo = (W + 2 * pw - kw) // stride + 1
    tokens = _overlap_patch_embed_tokens(x, conv_w, conv_b, ln_g, ln_b,
                                         stride=stride)
    return tokens, Ho, Wo


# ------------------------------ reference ------------------------------------
def _reference(x, conv_w, conv_b, ln_g, ln_b, *, stride=2):
    E, C, kh, kw = conv_w.shape
    ph, pw = kh // 2, kw // 2
    y = lax.conv_general_dilated(
        x, conv_w, window_strides=(stride, stride),
        padding=((ph, ph), (pw, pw)),
        dimension_numbers=("NCHW", "OIHW", "NCHW"))
    y = y + conv_b[None, :, None, None]
    N, _, Ho, Wo = y.shape
    y = y.reshape(N, E, Ho * Wo).transpose(0, 2, 1)
    mean = y.mean(-1, keepdims=True)
    var = ((y - mean) ** 2).mean(-1, keepdims=True)
    y = (y - mean) * lax.rsqrt(var + 1e-5) * ln_g + ln_b
    return y, Ho, Wo


# -------------------------------- main ----------------------------------------
if __name__ == "__main__":
    # Small shapes consistent with the module: patch_size=3, stride=2,
    # padding=1, mask_chans=0 (no mask branch).
    N, C, H, W = 2, 4, 16, 16
    E = 32
    kh = kw = 3
    stride = 2

    key = jax.random.PRNGKey(0)
    k1, k2, k3 = jax.random.split(key, 3)
    x = jax.random.normal(k1, (N, C, H, W), dtype=jnp.float32)
    conv_w = 0.1 * jax.random.normal(k2, (E, C, kh, kw), dtype=jnp.float32)
    conv_b = 0.05 * jax.random.normal(k3, (E,), dtype=jnp.float32)
    ln_g = jnp.ones((E,), dtype=jnp.float32)
    ln_b = jnp.zeros((E,), dtype=jnp.float32)

    tokens, Ho, Wo = overlap_patch_embed(x, conv_w, conv_b, ln_g, ln_b,
                                         stride=stride)
    tokens = jax.block_until_ready(tokens)

    ref, Ho_r, Wo_r = _reference(x, conv_w, conv_b, ln_g, ln_b, stride=stride)
    assert (Ho, Wo) == (Ho_r, Wo_r)
    assert tokens.shape == (N, Ho * Wo, E)
    assert jnp.allclose(tokens, ref, atol=2e-4, rtol=2e-4)

    print("KERNEL_OK")
</pallas_src>

<mosaic_0001>
module attributes {stable_mosaic.version = 11 : i64} {
  func.func @_proj_ln_kernel(%arg0: i32, %arg1: memref<128x36xf32, #tpu.memory_space<vmem>>, %arg2: memref<36x128xf32, #tpu.memory_space<vmem>>, %arg3: memref<1x128xf32, #tpu.memory_space<vmem>>, %arg4: memref<1x128xf32, #tpu.memory_space<vmem>>, %arg5: memref<1x128xf32, #tpu.memory_space<vmem>>, %arg6: memref<128x128xf32, #tpu.memory_space<vmem>>) attributes {dimension_semantics = [#tpu.dimension_semantics<parallel>], iteration_bounds = array<i64: 1>, scalar_prefetch = 0 : i64, scratch_operands = 0 : i64, tpu.core_type = #tpu.core_type<tc>, window_params = [{transform_indices = @transform_0, window_bounds = array<i64: 128, 36>}, {pipeline_mode = #tpu.pipeline_mode<synchronous>, transform_indices = @transform_1, window_bounds = array<i64: 36, 128>}, {pipeline_mode = #tpu.pipeline_mode<synchronous>, transform_indices = @transform_2, window_bounds = array<i64: 1, 128>}, {pipeline_mode = #tpu.pipeline_mode<synchronous>, transform_indices = @transform_3, window_bounds = array<i64: 1, 128>}, {pipeline_mode = #tpu.pipeline_mode<synchronous>, transform_indices = @transform_4, window_bounds = array<i64: 1, 128>}, {transform_indices = @transform_5, window_bounds = array<i64: 128, 128>}]} {
    %c0 = arith.constant 0 : index
    %c0_0 = arith.constant 0 : index
    %0 = vector.load %arg1[%c0, %c0_0] : memref<128x36xf32, #tpu.memory_space<vmem>>, vector<128x36xf32>
    %c0_1 = arith.constant 0 : index
    %c0_2 = arith.constant 0 : index
    %1 = vector.load %arg2[%c0_1, %c0_2] : memref<36x128xf32, #tpu.memory_space<vmem>>, vector<36x128xf32>
    %cst = arith.constant dense<0.000000e+00> : vector<128x128xf32>
    %2 = tpu.matmul %0, %1, %cst {dimension_numbers = #tpu.dot_dimension_numbers<[1], [0], [0], [1], [0, 0, 1, 1], [], []>} : vector<128x36xf32>, vector<36x128xf32>, vector<128x128xf32> -> vector<128x128xf32>
    %c0_3 = arith.constant 0 : index
    %c0_4 = arith.constant 0 : index
    %3 = vector.load %arg3[%c0_3, %c0_4] : memref<1x128xf32, #tpu.memory_space<vmem>>, vector<1x128xf32>
    %4 = vector.broadcast %3 : vector<1x128xf32> to vector<128x128xf32>
    %5 = arith.addf %2, %4 : vector<128x128xf32>
    %cst_5 = arith.constant dense<0.000000e+00> : vector<128xf32>
    %6 = vector.multi_reduction <add>, %5, %cst_5 [1] : vector<128x128xf32> to vector<128xf32>
    %7 = vector.shape_cast %6 : vector<128xf32> to vector<128x1xf32>
    %8 = arith.mulf %5, %5 : vector<128x128xf32>
    %cst_6 = arith.constant dense<0.000000e+00> : vector<128xf32>
    %9 = vector.multi_reduction <add>, %8, %cst_6 [1] : vector<128x128xf32> to vector<128xf32>
    %10 = vector.shape_cast %9 : vector<128xf32> to vector<128x1xf32>
    %cst_7 = arith.constant 3.125000e-02 : f32
    %11 = vector.broadcast %cst_7 : f32 to vector<128x1xf32>
    %12 = arith.mulf %7, %11 : vector<128x1xf32>
    %cst_8 = arith.constant 3.125000e-02 : f32
    %13 = vector.broadcast %cst_8 : f32 to vector<128x1xf32>
    %14 = arith.mulf %10, %13 : vector<128x1xf32>
    %15 = arith.mulf %12, %12 : vector<128x1xf32>
    %16 = arith.subf %14, %15 : vector<128x1xf32>
    %cst_9 = arith.constant 0.000000e+00 : f32
    %17 = vector.broadcast %cst_9 : f32 to vector<128x1xf32>
    %18 = arith.maximumf %16, %17 : vector<128x1xf32>
    %19 = vector.broadcast %12 : vector<128x1xf32> to vector<128x128xf32>
    %20 = arith.subf %5, %19 : vector<128x128xf32>
    %cst_10 = arith.constant 9.99999974E-6 : f32
    %21 = vector.broadcast %cst_10 : f32 to vector<128x1xf32>
    %22 = arith.addf %18, %21 : vector<128x1xf32>
    %23 = math.rsqrt %22 : vector<128x1xf32>
    %24 = vector.broadcast %23 : vector<128x1xf32> to vector<128x128xf32>
    %25 = arith.mulf %20, %24 : vector<128x128xf32>
    %c0_11 = arith.constant 0 : index
    %c0_12 = arith.constant 0 : index
    %26 = vector.load %arg4[%c0_11, %c0_12] : memref<1x128xf32, #tpu.memory_space<vmem>>, vector<1x128xf32>
    %27 = vector.broadcast %26 : vector<1x128xf32> to vector<128x128xf32>
    %28 = arith.mulf %25, %27 : vector<128x128xf32>
    %c0_13 = arith.constant 0 : index
    %c0_14 = arith.constant 0 : index
    %29 = vector.load %arg5[%c0_13, %c0_14] : memref<1x128xf32, #tpu.memory_space<vmem>>, vector<1x128xf32>
    %30 = vector.broadcast %29 : vector<1x128xf32> to vector<128x128xf32>
    %31 = arith.addf %28, %30 : vector<128x128xf32>
    %c0_15 = arith.constant 0 : index
    %c0_16 = arith.constant 0 : index
    %32 = vector.load %arg6[%c0_15, %c0_16] : memref<128x128xf32, #tpu.memory_space<vmem>>, vector<128x128xf32>
    tpu.vector_store %arg6[%c0_15, %c0_16], %31 {strides = array<i32>} : memref<128x128xf32, #tpu.memory_space<vmem>>, vector<128x128xf32>,
    return
  }
  func.func @transform_0(%arg0: i32) -> (i32, i32) {
    %c0_i32 = arith.constant 0 : i32
    %c0_i32_0 = arith.constant 0 : i32
    return %arg0, %c0_i32 : i32, i32
  }
  func.func @transform_1(%arg0: i32) -> (i32, i32) {
    %c0_i32 = arith.constant 0 : i32
    %c0_i32_0 = arith.constant 0 : i32
    %c0_i32_1 = arith.constant 0 : i32
    return %c0_i32, %c0_i32_0 : i32, i32
  }
  func.func @transform_2(%arg0: i32) -> (i32, i32) {
    %c0_i32 = arith.constant 0 : i32
    %c0_i32_0 = arith.constant 0 : i32
    %c0_i32_1 = arith.constant 0 : i32
    return %c0_i32, %c0_i32_0 : i32, i32
  }
  func.func @transform_3(%arg0: i32) -> (i32, i32) {
    %c0_i32 = arith.constant 0 : i32
    %c0_i32_0 = arith.constant 0 : i32
    %c0_i32_1 = arith.constant 0 : i32
    return %c0_i32, %c0_i32_0 : i32, i32
  }
  func.func @transform_4(%arg0: i32) -> (i32, i32) {
    %c0_i32 = arith.constant 0 : i32
    %c0_i32_0 = arith.constant 0 : i32
    %c0_i32_1 = arith.constant 0 : i32
    return %c0_i32, %c0_i32_0 : i32, i32
  }
  func.func @transform_5(%arg0: i32) -> (i32, i32) {
    %c0_i32 = arith.constant 0 : i32
    %c0_i32_0 = arith.constant 0 : i32
    return %arg0, %c0_i32 : i32, i32
  }
}

</mosaic_0001>

<llo_original>
// kernel: _overlap_patch_embed_tokens.1
$region0: #{_overlap_patch_embed_tokens.1}
  #allocation0 [shape = 'u32[]', space=smem, size = 0x4, offset = 0x4, fixed_abs, tag = 'smem constant byte address 0x4 - core index']
  #allocation1 [shape = 'u32[72,128]{1,0:T(1,128)}', space=vmem, size = 0x9000, scoped, tag = 'internal scratch']
  %s0 = inlined_call_operand.vmem [shape: f32[128,36], index: 0, kind: input, shape index: {}]
  %s1 = inlined_call_operand.vmem [shape: f32[36,128], index: 1, kind: input, shape index: {}]
  %s2 = inlined_call_operand.vmem [shape: f32[1,128], index: 2, kind: input, shape index: {}]
  %s3 = inlined_call_operand.vmem [shape: f32[1,128], index: 3, kind: input, shape index: {}]
  %s4 = inlined_call_operand.vmem [shape: f32[1,128], index: 4, kind: input, shape index: {}]
  %s5 = inlined_call_operand.vmem [shape: f32[128,128], index: 5, kind: output, shape index: {}]
  %s6 = sld [smem:[#allocation0]]
  $region30: #{_overlap_patch_embed_tokens.1} parent=0
    _
  %s8 = ssub.s32 1, %s6
  %s9 = scalar_select 0, %s8, %s6
  // Predicated region
  $region2: #{_overlap_patch_embed_tokens.1} parent=0 // pred_check
    _
  $region3: #{_overlap_patch_embed_tokens.1} parent=0 // pred_check_branch
    %11 = sbr.rel (0) target = $region5
  $region4: #{_overlap_patch_embed_tokens.1} parent=0 // pred_region
    _
  $region5: #{_overlap_patch_embed_tokens.1} parent=0 // pred_fallthru
    _
  // Predicated region
  $region6: #{_overlap_patch_embed_tokens.1} parent=0 // pred_check
    _
  $region7: #{_overlap_patch_embed_tokens.1} parent=0 // pred_check_branch
    %13 = sbr.rel (0) target = $region9
  $region8: #{_overlap_patch_embed_tokens.1} parent=0 // pred_region
    _
  $region9: #{_overlap_patch_embed_tokens.1} parent=0 // pred_fallthru
    _
  // Predicated region
  $region10: #{_overlap_patch_embed_tokens.1} parent=0 // pred_check
    _
  $region11: #{_overlap_patch_embed_tokens.1} parent=0 // pred_check_branch
    %15 = sbr.rel (0) target = $region13
  $region12: #{_overlap_patch_embed_tokens.1} parent=0 // pred_region
    _
  $region13: #{_overlap_patch_embed_tokens.1} parent=0 // pred_fallthru
    _
  // Predicated region
  $region14: #{_overlap_patch_embed_tokens.1} parent=0 // pred_check
    _
  $region15: #{_overlap_patch_embed_tokens.1} parent=0 // pred_check_branch
    %17 = sbr.rel (0) target = $region17
  $region16: #{_overlap_patch_embed_tokens.1} parent=0 // pred_region
    _
  $region17: #{_overlap_patch_embed_tokens.1} parent=0 // pred_fallthru
    _
  // Predicated region
  $region18: #{_overlap_patch_embed_tokens.1} parent=0 // pred_check
    _
  $region19: #{_overlap_patch_embed_tokens.1} parent=0 // pred_check_branch
    %19 = sbr.rel (0) target = $region21
  $region20: #{_overlap_patch_embed_tokens.1} parent=0 // pred_region
    _
  $region21: #{_overlap_patch_embed_tokens.1} parent=0 // pred_fallthru
    _
  %v20 = vld [vmem:[%s0] sm:$0xff]
  %v21 = vld [vmem:[%s0 + $0x8] sm:$0xff]
  %v22 = vld [vmem:[%s0 + $0x10] sm:$0xff]
  %v23 = vld [vmem:[%s0 + $0x18] sm:$0xff]
  %v24 = vld [vmem:[%s0 + $0x20] sm:$0xff]
  %v25 = vld [vmem:[%s0 + $0x28] sm:$0xff]
  %v26 = vld [vmem:[%s0 + $0x30] sm:$0xff]
  %v27 = vld [vmem:[%s0 + $0x38] sm:$0xff]
  %v28 = vld [vmem:[%s0 + $0x40] sm:$0xff]
  %v29 = vld [vmem:[%s0 + $0x48] sm:$0xff]
  %v30 = vld [vmem:[%s0 + $0x50] sm:$0xff]
  %v31 = vld [vmem:[%s0 + $0x58] sm:$0xff]
  %v32 = vld [vmem:[%s0 + $0x60] sm:$0xff]
  %v33 = vld [vmem:[%s0 + $0x68] sm:$0xff]
  %v34 = vld [vmem:[%s0 + $0x70] sm:$0xff]
  %v35 = vld [vmem:[%s0 + $0x78] sm:$0xff]
  %v36 = vld [vmem:[%s1] sm:$0xff]
  %v37 = vld [vmem:[%s1 + $0x8] sm:$0xff]
  %v38 = vld [vmem:[%s1 + $0x10] sm:$0xff]
  %v39 = vld [vmem:[%s1 + $0x18] sm:$0xff]
  %v40 = vld [vmem:[%s1 + $0x20] sm:$0xf]
  %v41 = vld [vmem:[%s2] sm:$0x1]
  %v43 = vperm.slane %v41, 0
  %vm45 = vcmask 293888
  %v47 = vsel %vm45, %v20, 0
  %v50 = vsel %vm45, %v21, 0
  %v53 = vsel %vm45, %v22, 0
  %v56 = vsel %vm45, %v23, 0
  %v59 = vsel %vm45, %v24, 0
  %v62 = vsel %vm45, %v25, 0
  %v65 = vsel %vm45, %v26, 0
  %v68 = vsel %vm45, %v27, 0
  %v71 = vsel %vm45, %v28, 0
  %v74 = vsel %vm45, %v29, 0
  %v77 = vsel %vm45, %v30, 0
  %v80 = vsel %vm45, %v31, 0
  %v83 = vsel %vm45, %v32, 0
  %v86 = vsel %vm45, %v33, 0
  %v89 = vsel %vm45, %v34, 0
  %v92 = vsel %vm45, %v35, 0
  %vm94 = vcmask 1043456
  %v96 = vsel %vm94, %v40, 0
  %98 = vmatpush.msra.mxu0 0.0
  %99 = vmatpush.msra.mxu0 0.0
  %100 = vmatpush.msra.mxu0 0.0
  %101 = vmatpush.msra.mxu0 0.0
  %102 = vmatpush.msra.mxu0 0.0
  %103 = vmatpush.msra.mxu0 0.0
  %104 = vmatpush.msra.mxu0 0.0
  %105 = vmatpush.msra.mxu0 0.0
  %106 = vmatpush.msra.mxu0 0.0
  %107 = vmatpush.msra.mxu0 0.0
  %108 = vmatpush.msra.mxu0 0.0
  %109 = vmatpush.msra.mxu0 %v96
  %110 = vmatpush.msra.mxu0 %v39
  %111 = vmatpush.msra.mxu0 %v38
  %112 = vmatpush.msra.mxu0 %v37
  %113 = vmatpush.msra.mxu0 %v36
  %114 = vmatmul.f32.gmra.mxu0 %v47
  %v115 = vpop.f32.mrf.mxu0
  %v116 = vadd.f32 %v43, %v115
  %117 = vmatmul.f32.gmra.mxu0 %v50
  %v118 = vpop.f32.mrf.mxu0
  %v119 = vadd.f32 %v43, %v118
  %120 = vmatmul.f32.gmra.mxu0 %v53
  %v121 = vpop.f32.mrf.mxu0
  %v122 = vadd.f32 %v43, %v121
  %123 = vmatmul.f32.gmra.mxu0 %v56
  %v124 = vpop.f32.mrf.mxu0
  %v125 = vadd.f32 %v43, %v124
  %126 = vmatmul.f32.gmra.mxu0 %v59
  %v127 = vpop.f32.mrf.mxu0
  %v128 = vadd.f32 %v43, %v127
  %129 = vmatmul.f32.gmra.mxu0 %v62
  %v130 = vpop.f32.mrf.mxu0
  %v131 = vadd.f32 %v43, %v130
  %132 = vmatmul.f32.gmra.mxu0 %v65
  %v133 = vpop.f32.mrf.mxu0
  %v134 = vadd.f32 %v43, %v133
  %135 = vmatmul.f32.gmra.mxu0 %v68
  %v136 = vpop.f32.mrf.mxu0
  %v137 = vadd.f32 %v43, %v136
  %138 = vmatmul.f32.gmra.mxu0 %v71
  %v139 = vpop.f32.mrf.mxu0
  %v140 = vadd.f32 %v43, %v139
  %141 = vmatmul.f32.gmra.mxu0 %v74
  %v142 = vpop.f32.mrf.mxu0
  %v143 = vadd.f32 %v43, %v142
  %144 = vmatmul.f32.gmra.mxu0 %v77
  %v145 = vpop.f32.mrf.mxu0
  %v146 = vadd.f32 %v43, %v145
  %147 = vmatmul.f32.gmra.mxu0 %v80
  %v148 = vpop.f32.mrf.mxu0
  %v149 = vadd.f32 %v43, %v148
  %150 = vmatmul.f32.gmra.mxu0 %v83
  %v151 = vpop.f32.mrf.mxu0
  %v152 = vadd.f32 %v43, %v151
  %153 = vmatmul.f32.gmra.mxu0 %v86
  %v154 = vpop.f32.mrf.mxu0
  %v155 = vadd.f32 %v43, %v154
  %156 = vmatmul.f32.gmra.mxu0 %v89
  %v157 = vpop.f32.mrf.mxu0
  %v158 = vadd.f32 %v43, %v157
  %159 = vmatmul.f32.gmra.mxu0 %v92
  %v160 = vpop.f32.mrf.mxu0
  %v161 = vadd.f32 %v43, %v160
  %162 = vdwg.mxu0
  %163 = vadd.xlane.f32.xlu0 %v116
  %v164 = vpop.xlane.xlu0 %163
  %165 = vadd.xlane.f32.xlu0 %v119
  %v166 = vpop.xlane.xlu0 %165
  %167 = vadd.xlane.f32.xlu0 %v122
  %v168 = vpop.xlane.xlu0 %167
  %169 = vadd.xlane.f32.xlu0 %v125
  %v170 = vpop.xlane.xlu0 %169
  %171 = vadd.xlane.f32.xlu0 %v128
  %v172 = vpop.xlane.xlu0 %171
  %173 = vadd.xlane.f32.xlu0 %v131
  %v174 = vpop.xlane.xlu0 %173
  %175 = vadd.xlane.f32.xlu0 %v134
  %v176 = vpop.xlane.xlu0 %175
  %177 = vadd.xlane.f32.xlu0 %v137
  %v178 = vpop.xlane.xlu0 %177
  %179 = vadd.xlane.f32.xlu0 %v140
  %v180 = vpop.xlane.xlu0 %179
  %181 = vadd.xlane.f32.xlu0 %v143
  %v182 = vpop.xlane.xlu0 %181
  %183 = vadd.xlane.f32.xlu0 %v146
  %v184 = vpop.xlane.xlu0 %183
  %185 = vadd.xlane.f32.xlu0 %v149
  %v186 = vpop.xlane.xlu0 %185
  %187 = vadd.xlane.f32.xlu0 %v152
  %v188 = vpop.xlane.xlu0 %187
  %189 = vadd.xlane.f32.xlu0 %v155
  %v190 = vpop.xlane.xlu0 %189
  %191 = vadd.xlane.f32.xlu0 %v158
  %v192 = vpop.xlane.xlu0 %191
  %193 = vadd.xlane.f32.xlu0 %v161
  %v194 = vpop.xlane.xlu0 %193
  %v195 = vmul.f32 %v116, %v116
  %v196 = vmul.f32 %v119, %v119
  %v197 = vmul.f32 %v122, %v122
  %v198 = vmul.f32 %v125, %v125
  %v199 = vmul.f32 %v128, %v128
  %v200 = vmul.f32 %v131, %v131
  %v201 = vmul.f32 %v134, %v134
  %v202 = vmul.f32 %v137, %v137
  %v203 = vmul.f32 %v140, %v140
  %v204 = vmul.f32 %v143, %v143
  %v205 = vmul.f32 %v146, %v146
  %v206 = vmul.f32 %v149, %v149
  %v207 = vmul.f32 %v152, %v152
  %v208 = vmul.f32 %v155, %v155
  %v209 = vmul.f32 %v158, %v158
  %v210 = vmul.f32 %v161, %v161
  %211 = vadd.xlane.f32.xlu0 %v195
  %v212 = vpop.xlane.xlu0 %211
  %213 = vadd.xlane.f32.xlu0 %v196
  %v214 = vpop.xlane.xlu0 %213
  %215 = vadd.xlane.f32.xlu0 %v197
  %v216 = vpop.xlane.xlu0 %215
  %217 = vadd.xlane.f32.xlu0 %v198
  %v218 = vpop.xlane.xlu0 %217
  %219 = vadd.xlane.f32.xlu0 %v199
  %v220 = vpop.xlane.xlu0 %219
  %221 = vadd.xlane.f32.xlu0 %v200
  %v222 = vpop.xlane.xlu0 %221
  %223 = vadd.xlane.f32.xlu0 %v201
  %v224 = vpop.xlane.xlu0 %223
  %225 = vadd.xlane.f32.xlu0 %v202
  %v226 = vpop.xlane.xlu0 %225
  %227 = vadd.xlane.f32.xlu0 %v203
  %v228 = vpop.xlane.xlu0 %227
  %229 = vadd.xlane.f32.xlu0 %v204
  %v230 = vpop.xlane.xlu0 %229
  %231 = vadd.xlane.f32.xlu0 %v205
  %v232 = vpop.xlane.xlu0 %231
  %233 = vadd.xlane.f32.xlu0 %v206
  %v234 = vpop.xlane.xlu0 %233
  %235 = vadd.xlane.f32.xlu0 %v207
  %v236 = vpop.xlane.xlu0 %235
  %237 = vadd.xlane.f32.xlu0 %v208
  %v238 = vpop.xlane.xlu0 %237
  %239 = vadd.xlane.f32.xlu0 %v209
  %v240 = vpop.xlane.xlu0 %239
  %241 = vadd.xlane.f32.xlu0 %v210
  %v242 = vpop.xlane.xlu0 %241
  %v243 = vmul.f32 %v164, 0.03125
  %v244 = vmul.f32 %v166, 0.03125
  %v245 = vmul.f32 %v168, 0.03125
  %v246 = vmul.f32 %v170, 0.03125
  %v247 = vmul.f32 %v172, 0.03125
  %v248 = vmul.f32 %v174, 0.03125
  %v249 = vmul.f32 %v176, 0.03125
  %v250 = vmul.f32 %v178, 0.03125
  %v251 = vmul.f32 %v180, 0.03125
  %v252 = vmul.f32 %v182, 0.03125
  %v253 = vmul.f32 %v184, 0.03125
  %v254 = vmul.f32 %v186, 0.03125
  %v255 = vmul.f32 %v188, 0.03125
  %v256 = vmul.f32 %v190, 0.03125
  %v257 = vmul.f32 %v192, 0.03125
  %v258 = vmul.f32 %v194, 0.03125
  %v259 = vmul.f32 %v212, 0.03125
  %v260 = vmul.f32 %v214, 0.03125
  %v261 = vmul.f32 %v216, 0.03125
  %v262 = vmul.f32 %v218, 0.03125
  %v263 = vmul.f32 %v220, 0.03125
  %v264 = vmul.f32 %v222, 0.03125
  %v265 = vmul.f32 %v224, 0.03125
  %v266 = vmul.f32 %v226, 0.03125
  %v267 = vmul.f32 %v228, 0.03125
  %v268 = vmul.f32 %v230, 0.03125
  %v269 = vmul.f32 %v232, 0.03125
  %v270 = vmul.f32 %v234, 0.03125
  %v271 = vmul.f32 %v236, 0.03125
  %v272 = vmul.f32 %v238, 0.03125
  %v273 = vmul.f32 %v240, 0.03125
  %v274 = vmul.f32 %v242, 0.03125
  %v275 = vmul.f32 %v243, %v243
  %v276 = vmul.f32 %v244, %v244
  %v277 = vmul.f32 %v245, %v245
  %v278 = vmul.f32 %v246, %v246
  %v279 = vmul.f32 %v247, %v247
  %v280 = vmul.f32 %v248, %v248
  %v281 = vmul.f32 %v249, %v249
  %v282 = vmul.f32 %v250, %v250
  %v283 = vmul.f32 %v251, %v251
  %v284 = vmul.f32 %v252, %v252
  %v285 = vmul.f32 %v253, %v253
  %v286 = vmul.f32 %v254, %v254
  %v287 = vmul.f32 %v255, %v255
  %v288 = vmul.f32 %v256, %v256
  %v289 = vmul.f32 %v257, %v257
  %v290 = vmul.f32 %v258, %v258
  %v291 = vsub.f32 %v259, %v275
  %v292 = vsub.f32 %v260, %v276
  %v293 = vsub.f32 %v261, %v277
  %v294 = vsub.f32 %v262, %v278
  %v295 = vsub.f32 %v263, %v279
  %v296 = vsub.f32 %v264, %v280
  %v297 = vsub.f32 %v265, %v281
  %v298 = vsub.f32 %v266, %v282
  %v299 = vsub.f32 %v267, %v283
  %v300 = vsub.f32 %v268, %v284
  %v301 = vsub.f32 %v269, %v285
  %v302 = vsub.f32 %v270, %v286
  %v303 = vsub.f32 %v271, %v287
  %v304 = vsub.f32 %v272, %v288
  %v305 = vsub.f32 %v273, %v289
  %v306 = vsub.f32 %v274, %v290
  %v307 = vmax.f32 %v291, 0.0
  %v308 = vmax.f32 %v292, 0.0
  %v309 = vmax.f32 %v293, 0.0
  %v310 = vmax.f32 %v294, 0.0
  %v311 = vmax.f32 %v295, 0.0
  %v312 = vmax.f32 %v296, 0.0
  %v313 = vmax.f32 %v297, 0.0
  %v314 = vmax.f32 %v298, 0.0
  %v315 = vmax.f32 %v299, 0.0
  %v316 = vmax.f32 %v300, 0.0
  %v317 = vmax.f32 %v301, 0.0
  %v318 = vmax.f32 %v302, 0.0
  %v319 = vmax.f32 %v303, 0.0
  %v320 = vmax.f32 %v304, 0.0
  %v321 = vmax.f32 %v305, 0.0
  %v322 = vmax.f32 %v306, 0.0
  %v323 = vsub.f32 %v116, %v243
  %v324 = vsub.f32 %v119, %v244
  %v325 = vsub.f32 %v122, %v245
  %v326 = vsub.f32 %v125, %v246
  %v327 = vsub.f32 %v128, %v247
  %v328 = vsub.f32 %v131, %v248
  %v329 = vsub.f32 %v134, %v249
  %v330 = vsub.f32 %v137, %v250
  %v331 = vsub.f32 %v140, %v251
  %v332 = vsub.f32 %v143, %v252
  %v333 = vsub.f32 %v146, %v253
  %v334 = vsub.f32 %v149, %v254
  %v335 = vsub.f32 %v152, %v255
  %v336 = vsub.f32 %v155, %v256
  %v337 = vsub.f32 %v158, %v257
  %v338 = vsub.f32 %v161, %v258
  %v339 = vadd.f32 %v307, 1e-05
  %v340 = vadd.f32 %v308, 1e-05
  %v341 = vadd.f32 %v309, 1e-05
  %v342 = vadd.f32 %v310, 1e-05
  %v343 = vadd.f32 %v311, 1e-05
  %v344 = vadd.f32 %v312, 1e-05
  %v345 = vadd.f32 %v313, 1e-05
  %v346 = vadd.f32 %v314, 1e-05
  %v347 = vadd.f32 %v315, 1e-05
  %v348 = vadd.f32 %v316, 1e-05
  %v349 = vadd.f32 %v317, 1e-05
  %v350 = vadd.f32 %v318, 1e-05
  %v351 = vadd.f32 %v319, 1e-05
  %v352 = vadd.f32 %v320, 1e-05
  %v353 = vadd.f32 %v321, 1e-05
  %v354 = vadd.f32 %v322, 1e-05
  %v355 = vrsqrt.pop %v339
  %v356 = vmul.f32 %v355, %v339
  %v357 = vmul.f32 %v356, %v355
  %v358 = vmul.f32 0.5, %v357
  %v359 = vsub.f32 1.5, %v358
  %v360 = vmul.f32 %v355, %v359
  %vm361 = vweird.f32 %v339
  %vm362 = vweird.f32 %v355
  %vm363 = vmor %vm361, %vm362
  %v364 = vsel %vm363, %v355, %v360
  %v365 = vrsqrt.pop %v340
  %v366 = vmul.f32 %v365, %v340
  %v367 = vmul.f32 %v366, %v365
  %v368 = vmul.f32 0.5, %v367
  %v369 = vsub.f32 1.5, %v368
  %v370 = vmul.f32 %v365, %v369
  %vm371 = vweird.f32 %v340
  %vm372 = vweird.f32 %v365
  %vm373 = vmor %vm371, %vm372
  %v374 = vsel %vm373, %v365, %v370
  %v375 = vrsqrt.pop %v341
  %v376 = vmul.f32 %v375, %v341
  %v377 = vmul.f32 %v376, %v375
  %v378 = vmul.f32 0.5, %v377
  %v379 = vsub.f32 1.5, %v378
  %v380 = vmul.f32 %v375, %v379
  %vm381 = vweird.f32 %v341
  %vm382 = vweird.f32 %v375
  %vm383 = vmor %vm381, %vm382
  %v384 = vsel %vm383, %v375, %v380
  %v385 = vrsqrt.pop %v342
  %v386 = vmul.f32 %v385, %v342
  %v387 = vmul.f32 %v386, %v385
  %v388 = vmul.f32 0.5, %v387
  %v389 = vsub.f32 1.5, %v388
  %v390 = vmul.f32 %v385, %v389
  %vm391 = vweird.f32 %v342
  %vm392 = vweird.f32 %v385
  %vm393 = vmor %vm391, %vm392
  %v394 = vsel %vm393, %v385, %v390
  %v395 = vrsqrt.pop %v343
  %v396 = vmul.f32 %v395, %v343
  %v397 = vmul.f32 %v396, %v395
  %v398 = vmul.f32 0.5, %v397
  %v399 = vsub.f32 1.5, %v398
  %v400 = vmul.f32 %v395, %v399
  %vm401 = vweird.f32 %v343
  %vm402 = vweird.f32 %v395
  %vm403 = vmor %vm401, %vm402
  %v404 = vsel %vm403, %v395, %v400
  %v405 = vrsqrt.pop %v344
  %v406 = vmul.f32 %v405, %v344
  %v407 = vmul.f32 %v406, %v405
  %v408 = vmul.f32 0.5, %v407
  %v409 = vsub.f32 1.5, %v408
  %v410 = vmul.f32 %v405, %v409
  %vm411 = vweird.f32 %v344
  %vm412 = vweird.f32 %v405
  %vm413 = vmor %vm411, %vm412
  %v414 = vsel %vm413, %v405, %v410
  %v415 = vrsqrt.pop %v345
  %v416 = vmul.f32 %v415, %v345
  %v417 = vmul.f32 %v416, %v415
  %v418 = vmul.f32 0.5, %v417
  %v419 = vsub.f32 1.5, %v418
  %v420 = vmul.f32 %v415, %v419
  %vm421 = vweird.f32 %v345
  %vm422 = vweird.f32 %v415
  %vm423 = vmor %vm421, %vm422
  %v424 = vsel %vm423, %v415, %v420
  %v425 = vrsqrt.pop %v346
  %v426 = vmul.f32 %v425, %v346
  %v427 = vmul.f32 %v426, %v425
  %v428 = vmul.f32 0.5, %v427
  %v429 = vsub.f32 1.5, %v428
  %v430 = vmul.f32 %v425, %v429
  %vm431 = vweird.f32 %v346
  %vm432 = vweird.f32 %v425
  %vm433 = vmor %vm431, %vm432
  %v434 = vsel %vm433, %v425, %v430
  %v435 = vrsqrt.pop %v347
  %v436 = vmul.f32 %v435, %v347
  %v437 = vmul.f32 %v436, %v435
  %v438 = vmul.f32 0.5, %v437
  %v439 = vsub.f32 1.5, %v438
  %v440 = vmul.f32 %v435, %v439
  %vm441 = vweird.f32 %v347
  %vm442 = vweird.f32 %v435
  %vm443 = vmor %vm441, %vm442
  %v444 = vsel %vm443, %v435, %v440
  %v445 = vrsqrt.pop %v348
  %v446 = vmul.f32 %v445, %v348
  %v447 = vmul.f32 %v446, %v445
  %v448 = vmul.f32 0.5, %v447
  %v449 = vsub.f32 1.5, %v448
  %v450 = vmul.f32 %v445, %v449
  %vm451 = vweird.f32 %v348
  %vm452 = vweird.f32 %v445
  %vm453 = vmor %vm451, %vm452
  %v454 = vsel %vm453, %v445, %v450
  %v455 = vrsqrt.pop %v349
  %v456 = vmul.f32 %v455, %v349
  %v457 = vmul.f32 %v456, %v455
  %v458 = vmul.f32 0.5, %v457
  %v459 = vsub.f32 1.5, %v458
  %v460 = vmul.f32 %v455, %v459
  %vm461 = vweird.f32 %v349
  %vm462 = vweird.f32 %v455
  %vm463 = vmor %vm461, %vm462
  %v464 = vsel %vm463, %v455, %v460
  %v465 = vrsqrt.pop %v350
  %v466 = vmul.f32 %v465, %v350
  %v467 = vmul.f32 %v466, %v465
  %v468 = vmul.f32 0.5, %v467
  %v469 = vsub.f32 1.5, %v468
  %v470 = vmul.f32 %v465, %v469
  %vm471 = vweird.f32 %v350
  %vm472 = vweird.f32 %v465
  %vm473 = vmor %vm471, %vm472
  %v474 = vsel %vm473, %v465, %v470
  %v475 = vrsqrt.pop %v351
  %v476 = vmul.f32 %v475, %v351
  %v477 = vmul.f32 %v476, %v475
  %v478 = vmul.f32 0.5, %v477
  %v479 = vsub.f32 1.5, %v478
  %v480 = vmul.f32 %v475, %v479
  %vm481 = vweird.f32 %v351
  %vm482 = vweird.f32 %v475
  %vm483 = vmor %vm481, %vm482
  %v484 = vsel %vm483, %v475, %v480
  %v485 = vrsqrt.pop %v352
  %v486 = vmul.f32 %v485, %v352
  %v487 = vmul.f32 %v486, %v485
  %v488 = vmul.f32 0.5, %v487
  %v489 = vsub.f32 1.5, %v488
  %v490 = vmul.f32 %v485, %v489
  %vm491 = vweird.f32 %v352
  %vm492 = vweird.f32 %v485
  %vm493 = vmor %vm491, %vm492
  %v494 = vsel %vm493, %v485, %v490
  %v495 = vrsqrt.pop %v353
  %v496 = vmul.f32 %v495, %v353
  %v497 = vmul.f32 %v496, %v495
  %v498 = vmul.f32 0.5, %v497
  %v499 = vsub.f32 1.5, %v498
  %v500 = vmul.f32 %v495, %v499
  %vm501 = vweird.f32 %v353
  %vm502 = vweird.f32 %v495
  %vm503 = vmor %vm501, %vm502
  %v504 = vsel %vm503, %v495, %v500
  %v505 = vrsqrt.pop %v354
  %v506 = vmul.f32 %v505, %v354
  %v507 = vmul.f32 %v506, %v505
  %v508 = vmul.f32 0.5, %v507
  %v509 = vsub.f32 1.5, %v508
  %v510 = vmul.f32 %v505, %v509
  %vm511 = vweird.f32 %v354
  %vm512 = vweird.f32 %v505
  %vm513 = vmor %vm511, %vm512
  %v514 = vsel %vm513, %v505, %v510
  %v515 = vmul.f32 %v323, %v364
  %v516 = vmul.f32 %v324, %v374
  %v517 = vmul.f32 %v325, %v384
  %v518 = vmul.f32 %v326, %v394
  %v519 = vmul.f32 %v327, %v404
  %v520 = vmul.f32 %v328, %v414
  %v521 = vmul.f32 %v329, %v424
  %v522 = vmul.f32 %v330, %v434
  %v523 = vmul.f32 %v331, %v444
  %v524 = vmul.f32 %v332, %v454
  %v525 = vmul.f32 %v333, %v464
  %v526 = vmul.f32 %v334, %v474
  %v527 = vmul.f32 %v335, %v484
  %v528 = vmul.f32 %v336, %v494
  %v529 = vmul.f32 %v337, %v504
  %v530 = vmul.f32 %v338, %v514
  %v531 = vld [vmem:[%s3] sm:$0x1]
  %v533 = vperm.slane %v531, 0
  %v535 = vmul.f32 %v515, %v533
  %v536 = vmul.f32 %v516, %v533
  %v537 = vmul.f32 %v517, %v533
  %v538 = vmul.f32 %v518, %v533
  %v539 = vmul.f32 %v519, %v533
  %v540 = vmul.f32 %v520, %v533
  %v541 = vmul.f32 %v521, %v533
  %v542 = vmul.f32 %v522, %v533
  %v543 = vmul.f32 %v523, %v533
  %v544 = vmul.f32 %v524, %v533
  %v545 = vmul.f32 %v525, %v533
  %v546 = vmul.f32 %v526, %v533
  %v547 = vmul.f32 %v527, %v533
  %v548 = vmul.f32 %v528, %v533
  %v549 = vmul.f32 %v529, %v533
  %v550 = vmul.f32 %v530, %v533
  %v551 = vld [vmem:[%s4] sm:$0x1]
  %v553 = vperm.slane %v551, 0
  %v555 = vadd.f32 %v535, %v553
  %v556 = vadd.f32 %v536, %v553
  %v557 = vadd.f32 %v537, %v553
  %v558 = vadd.f32 %v538, %v553
  %v559 = vadd.f32 %v539, %v553
  %v560 = vadd.f32 %v540, %v553
  %v561 = vadd.f32 %v541, %v553
  %v562 = vadd.f32 %v542, %v553
  %v563 = vadd.f32 %v543, %v553
  %v564 = vadd.f32 %v544, %v553
  %v565 = vadd.f32 %v545, %v553
  %v566 = vadd.f32 %v546, %v553
  %v567 = vadd.f32 %v547, %v553
  %v568 = vadd.f32 %v548, %v553
  %v569 = vadd.f32 %v549, %v553
  %v570 = vadd.f32 %v550, %v553
  %571 = vst [vmem:[%s5] sm:$0xff] %v555
  %572 = vst [vmem:[%s5 + $0x8] sm:$0xff] %v556
  %573 = vst [vmem:[%s5 + $0x10] sm:$0xff] %v557
  %574 = vst [vmem:[%s5 + $0x18] sm:$0xff] %v558
  %575 = vst [vmem:[%s5 + $0x20] sm:$0xff] %v559
  %576 = vst [vmem:[%s5 + $0x28] sm:$0xff] %v560
  %577 = vst [vmem:[%s5 + $0x30] sm:$0xff] %v561
  %578 = vst [vmem:[%s5 + $0x38] sm:$0xff] %v562
  %579 = vst [vmem:[%s5 + $0x40] sm:$0xff] %v563
  %580 = vst [vmem:[%s5 + $0x48] sm:$0xff] %v564
  %581 = vst [vmem:[%s5 + $0x50] sm:$0xff] %v565
  %582 = vst [vmem:[%s5 + $0x58] sm:$0xff] %v566
  %583 = vst [vmem:[%s5 + $0x60] sm:$0xff] %v567
  %584 = vst [vmem:[%s5 + $0x68] sm:$0xff] %v568
  %585 = vst [vmem:[%s5 + $0x70] sm:$0xff] %v569
  %586 = vst [vmem:[%s5 + $0x78] sm:$0xff] %v570
  // Predicated region
  $region22: #{_overlap_patch_embed_tokens.1} parent=0 // pred_check
    _
  $region23: #{_overlap_patch_embed_tokens.1} parent=0 // pred_check_branch
    %588 = sbr.rel (0) target = $region25
  $region24: #{_overlap_patch_embed_tokens.1} parent=0 // pred_region
    _
  $region25: #{_overlap_patch_embed_tokens.1} parent=0 // pred_fallthru
    _
  // Predicated region
  $region26: #{_overlap_patch_embed_tokens.1} parent=0 // pred_check
    _
  $region27: #{_overlap_patch_embed_tokens.1} parent=0 // pred_check_branch
    %590 = sbr.rel (0) target = $region29
  $region28: #{_overlap_patch_embed_tokens.1} parent=0 // pred_region
    _
  $region29: #{_overlap_patch_embed_tokens.1} parent=0 // pred_fallthru
    _

</llo_original>
